<compile_context>
chip_gen: v5e
topology: v5e:2x2
jax: 0.10.0
libtpu: 0.0.40
codegen_flags: <defaults>
</compile_context>

<pallas_src>
import functools

import jax
import jax.numpy as jnp
from jax.experimental import pallas as pl
from jax.experimental.pallas import tpu as pltpu

PAD_TOKEN_ID = 0  # deterministic "config.pad_token_id"


# ---------------------------------------------------------------------------
# Kernels
# ---------------------------------------------------------------------------
def _mean_pool_kernel(ids_ref, x_ref, o_ref, *, pad_token_id):
    """Single-shot path (whole S in one block).

    ids_ref: (TB, 1, S) int32   x_ref: (TB, S, TH)   o_ref: (TB, 1, TH)
    """
    mask = (ids_ref[...] != pad_token_id).astype(jnp.float32)      # (TB, 1, S)
    denom = jnp.sum(mask, axis=-1, keepdims=True)                  # (TB, 1, 1)
    # MXU contraction over S with f32 accumulation.  The 0/1 mask is exact in
    # x's native dtype, so bf16 inputs never need a full-tile f32 upcast.
    tb = x_ref.shape[0]
    if tb == 1:
        pooled = jnp.dot(mask[0].astype(x_ref.dtype), x_ref[0],
                         preferred_element_type=jnp.float32)[None]  # (1,1,TH)
    else:
        pooled = jnp.einsum("bos,bsh->boh",
                            mask.astype(x_ref.dtype), x_ref[...],
                            preferred_element_type=jnp.float32)     # (TB,1,TH)
    # NOTE: an all-padding row gives denom == 0 -> Inf/NaN, same as the
    # PyTorch reference (documented precondition: >= 1 non-pad token per row).
    o_ref[...] = (pooled * (1.0 / denom)).astype(o_ref.dtype)


def _mean_pool_sreduce_kernel(ids_ref, x_ref, o_ref, acc_ref, cnt_ref, *,
                              pad_token_id):
    """Long-sequence path: innermost grid axis reduces over S tiles.

    ids_ref: (1, 1, TS) int32   x_ref: (1, TS, H)   o_ref: (1, 1, H)
    acc_ref: VMEM (1, H) f32    cnt_ref: VMEM (1, 1) f32
    """
    s = pl.program_id(1)

    @pl.when(s == 0)
    def _():
        acc_ref[...] = jnp.zeros_like(acc_ref)
        cnt_ref[...] = jnp.zeros_like(cnt_ref)

    mask = (ids_ref[0] != pad_token_id).astype(jnp.float32)        # (1, TS)
    cnt_ref[...] += jnp.sum(mask, axis=-1, keepdims=True)          # (1, 1)
    acc_ref[...] += jnp.dot(mask.astype(x_ref.dtype), x_ref[0],
                            preferred_element_type=jnp.float32)    # (1, H)

    @pl.when(s == pl.num_programs(1) - 1)
    def _():
        o_ref[...] = ((acc_ref[...] * (1.0 / cnt_ref[...]))[None]
                      ).astype(o_ref.dtype)


# ---------------------------------------------------------------------------
# Generation-aware VMEM budgeting
# ---------------------------------------------------------------------------
def _vmem_capacity_bytes():
    try:
        info = pltpu.get_tpu_info()
        cap = getattr(info, "vmem_capacity_bytes", None)
        if cap:
            return int(cap)
    except Exception:
        pass
    return 64 << 20  # conservative fallback: v7x physical VMEM per TensorCore


def _budgets():
    cap = _vmem_capacity_bytes()
    # Scoped VMEM limit: half of physical (v5e/v6e -> 64 MiB, v7x -> 32 MiB).
    vmem_limit = min(cap // 2, 64 << 20)
    # Per-buffer x-tile budget: double-buffered x uses at most ~half the
    # scoped limit, leaving room for ids/out blocks + compiler scratch.
    tile_budget = vmem_limit // 4
    return tile_budget, vmem_limit


def _choose_batch_tile(B, tb_cap, min_steps=4):
    """Largest divisor of B <= tb_cap, keeping >= min_steps grid steps when
    possible so both v7x TensorCores stay busy under 'parallel' semantics."""
    tb_cap = max(1, min(tb_cap, B))
    if B >= min_steps:
        tb_cap = min(tb_cap, max(1, B // min_steps))
    for tb in range(tb_cap, 0, -1):
        if B % tb == 0:
            return tb
    return 1


# ---------------------------------------------------------------------------
# Wrapper
# ---------------------------------------------------------------------------
def mean_pooling(x, input_token_ids, pad_token_id=PAD_TOKEN_ID, *,
                 tile_budget_bytes=None):
    """Masked mean pool over the sequence axis. x: (B, S, H), ids: (B, S)."""
    B, S, H = x.shape
    itemsize = x.dtype.itemsize
    ids3 = input_token_ids.astype(jnp.int32).reshape(B, 1, S)  # S lane-dense

    tile_budget, vmem_limit = _budgets()
    if tile_budget_bytes is not None:
        tile_budget = int(tile_budget_bytes)

    cost = pl.CostEstimate(
        flops=2 * B * S * H,
        transcendentals=0,
        bytes_accessed=B * S * H * itemsize + B * H * itemsize + B * S * 4)

    def cparams(sem):
        return pltpu.CompilerParams(dimension_semantics=sem,
                                    vmem_limit_bytes=vmem_limit)

    kernel = functools.partial(_mean_pool_kernel, pad_token_id=pad_token_id)

    # ---- Path A: contiguous (TB, S, H) batch blocks (preferred). ----------
    slab_bytes = S * H * itemsize
    if slab_bytes <= tile_budget:
        tb = _choose_batch_tile(B, tile_budget // slab_bytes)
        return pl.pallas_call(
            kernel,
            out_shape=jax.ShapeDtypeStruct((B, 1, H), x.dtype),
            grid=(B // tb,),
            in_specs=[
                pl.BlockSpec((tb, 1, S), lambda b: (b, 0, 0)),   # token ids
                pl.BlockSpec((tb, S, H), lambda b: (b, 0, 0)),   # hidden states
            ],
            out_specs=pl.BlockSpec((tb, 1, H), lambda b: (b, 0, 0)),
            compiler_params=cparams(("parallel",)),
            cost_estimate=cost,
        )(ids3, x)

    # ---- Path B: lane-dense (1, S, th) hidden tiles. -----------------------
    th = None
    if H % 128 == 0:
        for cand in range(H, 0, -128):
            if H % cand == 0 and S * cand * itemsize <= tile_budget:
                th = cand
                break
    if th is not None:
        return pl.pallas_call(
            kernel,
            out_shape=jax.ShapeDtypeStruct((B, 1, H), x.dtype),
            grid=(B, H // th),
            in_specs=[
                pl.BlockSpec((1, 1, S), lambda b, h: (b, 0, 0)),
                pl.BlockSpec((1, S, th), lambda b, h: (b, 0, h)),
            ],
            out_specs=pl.BlockSpec((1, 1, th), lambda b, h: (b, 0, h)),
            compiler_params=cparams(("parallel", "parallel")),
            cost_estimate=cost,
        )(ids3, x)

    # ---- Path C: huge S -> reduce over S tiles with an f32 accumulator. ----
    ts = max(128, (tile_budget // (H * itemsize)) // 128 * 128)
    # TODO(synk): if H is so large that even ts=128 exceeds the budget, also
    # tile H here (needs per-h-tile accumulators); not needed for real shapes.
    s_pad = pl.cdiv(S, ts) * ts
    if s_pad != S:
        # Pad with pad tokens (mask 0) and zero activations -> exact result.
        ids3 = jnp.pad(ids3, ((0, 0), (0, 0), (0, s_pad - S)),
                       constant_values=pad_token_id)
        x = jnp.pad(x, ((0, 0), (0, s_pad - S), (0, 0)))
    skernel = functools.partial(_mean_pool_sreduce_kernel,
                                pad_token_id=pad_token_id)
    return pl.pallas_call(
        skernel,
        out_shape=jax.ShapeDtypeStruct((B, 1, H), x.dtype),
        grid=(B, s_pad // ts),
        in_specs=[
            pl.BlockSpec((1, 1, ts), lambda b, s: (b, 0, s)),
            pl.BlockSpec((1, ts, H), lambda b, s: (b, s, 0)),
        ],
        out_specs=pl.BlockSpec((1, 1, H), lambda b, s: (b, 0, 0)),
        scratch_shapes=[pltpu.VMEM((1, H), jnp.float32),
                        pltpu.VMEM((1, 1), jnp.float32)],
        compiler_params=cparams(("parallel", "arbitrary")),
        cost_estimate=cost,
    )(ids3, x)


# ---------------------------------------------------------------------------
# Reference + test
# ---------------------------------------------------------------------------
def _reference(x, input_token_ids, pad_token_id=PAD_TOKEN_ID):
    mask = (input_token_ids != pad_token_id).astype(jnp.float32)       # (B, S)
    mean_mask = mask / jnp.sum(mask, axis=1, keepdims=True)            # (B, S)
    return jnp.sum(x * mean_mask[:, :, None], axis=1, keepdims=True)   # (B,1,H)


if __name__ == "__main__":
    key = jax.random.PRNGKey(0)

    def make_inputs(k, B, S, H, dtype=jnp.float32):
        kx, kids = jax.random.split(k)
        xv = jax.random.normal(kx, (B, S, H), dtype=dtype)
        ids = jax.random.randint(kids, (B, S), 0, 100, dtype=jnp.int32)
        ids = ids.at[:, 0].set(1)                      # >= 1 non-pad per row
        ids = ids.at[0, S - 2:].set(PAD_TOKEN_ID)      # force trailing pads
        ids = ids.at[1, S - 3:].set(PAD_TOKEN_ID)
        return xv, ids

    # Path A: contiguous (TB, S, H) batch blocks.
    x, ids = make_inputs(key, 2, 8, 32)
    out = jax.block_until_ready(mean_pooling(x, ids))
    assert out.shape == (2, 1, 32), out.shape
    assert jnp.allclose(out, _reference(x, ids), atol=1e-5, rtol=1e-5), "A"

    # Path B: hidden-axis tiling (forced with a tiny tile budget).
    x, ids = make_inputs(key, 2, 8, 256)
    out = jax.block_until_ready(
        mean_pooling(x, ids, tile_budget_bytes=8 * 128 * 4))
    assert jnp.allclose(out, _reference(x, ids), atol=1e-5, rtol=1e-5), "B"

    # Path C: S-reduction with f32 VMEM accumulator (forced tiny budget).
    x, ids = make_inputs(key, 2, 16, 256)
    out = jax.block_until_ready(mean_pooling(x, ids, tile_budget_bytes=2048))
    assert jnp.allclose(out, _reference(x, ids), atol=1e-5, rtol=1e-5), "C"

    print("KERNEL_OK")
</pallas_src>

<mosaic_0001>
module attributes {stable_mosaic.version = 11 : i64} {
  func.func @_mean_pool_kernel(%arg0: i32, %arg1: memref<2x1x8xi32, #tpu.memory_space<vmem>>, %arg2: memref<2x8x32xf32, #tpu.memory_space<vmem>>, %arg3: memref<2x1x32xf32, #tpu.memory_space<vmem>>) attributes {dimension_semantics = [#tpu.dimension_semantics<parallel>], iteration_bounds = array<i64: 1>, scalar_prefetch = 0 : i64, scratch_operands = 0 : i64, tpu.core_type = #tpu.core_type<tc>, window_params = [{transform_indices = @transform_0, window_bounds = array<i64: 2, 1, 8>}, {transform_indices = @transform_1, window_bounds = array<i64: 2, 8, 32>}, {transform_indices = @transform_2, window_bounds = array<i64: 2, 1, 32>}]} {
    %c0 = arith.constant 0 : index
    %c0_0 = arith.constant 0 : index
    %c0_1 = arith.constant 0 : index
    %0 = vector.load %arg1[%c0, %c0_0, %c0_1] : memref<2x1x8xi32, #tpu.memory_space<vmem>>, vector<2x1x8xi32>
    %c0_i32 = arith.constant 0 : i32
    %1 = vector.broadcast %c0_i32 : i32 to vector<2x1x8xi32>
    %2 = arith.cmpi ne, %0, %1 : vector<2x1x8xi32>
    %3 = arith.extui %2 : vector<2x1x8xi1> to vector<2x1x8xi32>
    %4 = arith.sitofp %3 : vector<2x1x8xi32> to vector<2x1x8xf32>
    %cst = arith.constant dense<0.000000e+00> : vector<2x1xf32>
    %5 = vector.multi_reduction <add>, %4, %cst [2] : vector<2x1x8xf32> to vector<2x1xf32>
    %6 = vector.shape_cast %5 : vector<2x1xf32> to vector<2x1x1xf32>
    %c0_2 = arith.constant 0 : index
    %c0_3 = arith.constant 0 : index
    %c0_4 = arith.constant 0 : index
    %7 = vector.load %arg2[%c0_2, %c0_3, %c0_4] : memref<2x8x32xf32, #tpu.memory_space<vmem>>, vector<2x8x32xf32>
    "tpu.trace_start"() <{level = 10 : i32, message = "bos,bsh->boh"}> : () -> ()
    %cst_5 = arith.constant dense<0.000000e+00> : vector<2x1x32xf32>
    %8 = tpu.matmul %4, %7, %cst_5 {dimension_numbers = #tpu.dot_dimension_numbers<[2], [1], [1], [2], [0, 0, 0, 1, 1, 2], [0], [0]>} : vector<2x1x8xf32>, vector<2x8x32xf32>, vector<2x1x32xf32> -> vector<2x1x32xf32>
    "tpu.trace_stop"() : () -> ()
    %cst_6 = arith.constant 1.000000e+00 : f32
    %9 = vector.broadcast %cst_6 : f32 to vector<2x1x1xf32>
    %10 = arith.divf %9, %6 : vector<2x1x1xf32>
    %11 = vector.broadcast %10 : vector<2x1x1xf32> to vector<2x1x32xf32>
    %12 = arith.mulf %8, %11 : vector<2x1x32xf32>
    %c0_7 = arith.constant 0 : index
    %c0_8 = arith.constant 0 : index
    %c0_9 = arith.constant 0 : index
    %13 = vector.load %arg3[%c0_7, %c0_8, %c0_9] : memref<2x1x32xf32, #tpu.memory_space<vmem>>, vector<2x1x32xf32>
    tpu.vector_store %arg3[%c0_7, %c0_8, %c0_9], %12 {strides = array<i32>} : memref<2x1x32xf32, #tpu.memory_space<vmem>>, vector<2x1x32xf32>,
    return
  }
  func.func @transform_0(%arg0: i32) -> (i32, i32, i32) {
    %c0_i32 = arith.constant 0 : i32
    %c0_i32_0 = arith.constant 0 : i32
    %c0_i32_1 = arith.constant 0 : i32
    return %arg0, %c0_i32, %c0_i32_0 : i32, i32, i32
  }
  func.func @transform_1(%arg0: i32) -> (i32, i32, i32) {
    %c0_i32 = arith.constant 0 : i32
    %c0_i32_0 = arith.constant 0 : i32
    %c0_i32_1 = arith.constant 0 : i32
    return %arg0, %c0_i32, %c0_i32_0 : i32, i32, i32
  }
  func.func @transform_2(%arg0: i32) -> (i32, i32, i32) {
    %c0_i32 = arith.constant 0 : i32
    %c0_i32_0 = arith.constant 0 : i32
    %c0_i32_1 = arith.constant 0 : i32
    return %arg0, %c0_i32, %c0_i32_0 : i32, i32, i32
  }
}

</mosaic_0001>

<llo_original>
// kernel: tpu_custom_call.1
$region0: #{tpu_custom_call.1}
  #allocation0 [shape = 'u32[]', space=smem, size = 0x4, offset = 0x4, fixed_abs, tag = 'smem constant byte address 0x4 - core index']
  #allocation1 [shape = 'u32[72,128]{1,0:T(1,128)}', space=vmem, size = 0x9000, scoped, tag = 'internal scratch']
  %s0 = inlined_call_operand.hbm [shape: s32[2,1,8], index: 0, kind: input, shape index: {}]
  %s1 = inlined_call_operand.hbm [shape: f32[2,8,32], index: 1, kind: input, shape index: {}]
  %s2 = inlined_call_operand.hbm [shape: f32[2,1,32], index: 2, kind: output, shape index: {}]
  %s3 = sld [smem:[#allocation0]]
  $region26: #{tpu_custom_call.1} parent=0
    _
  %s5 = ssub.s32 1, %s3
  %s6 = scalar_select 0, %s5, %s3
  $region1: #{tpu_custom_call.1} parent=0
    #allocation2 [shape = 'u8[1024]{0}', space=vmem, size = 0x400, scoped, tag = 'input window, operand 0, single buffered']
    #allocation3 [shape = 's32[1]{0}', space=sflag, size = 0x4, scoped, tag = 'scoped memory for tpu_custom_call.1']
    #allocation4 [shape = 's32[1]{0}', space=sflag, size = 0x4, scoped, tag = 'scoped memory for tpu_custom_call.1']
    #allocation5 [shape = 'u8[8192]{0}', space=vmem, size = 0x2000, scoped, tag = 'input window, operand 1, single buffered']
    #allocation6 [shape = 's32[1]{0}', space=sflag, size = 0x4, scoped, tag = 'scoped memory for tpu_custom_call.1']
    #allocation7 [shape = 'u8[1024]{0}', space=vmem, size = 0x400, scoped, tag = 'output window, operand 0, single buffered']
    %7 = vsyncpa [#allocation3], 0
    %8 = vsyncpa [#allocation6], 0
    %9 = vsyncpa [#allocation4], 0
    // Predicated region
    $region2: #{tpu_custom_call.1} parent=1 // pred_check
      _
    $region3: #{tpu_custom_call.1} parent=1 // pred_check_branch
      %11 = sbr.rel (0) target = $region5
    $region4: #{tpu_custom_call.1} parent=1 // pred_region
      %13 = vsyncadd [#allocation3], 0
      %s14 = sshll.u32 %s0, 4
      %s15 = int_to_ptr.hbm [resolvable:$true] %s14
      %s16 = sshll.u32 [#allocation2], 4
      %s17 = int_to_ptr.vmem [resolvable:$true] %s16
      %22 = dma.hbm_to_vmem [thread:$0]  %s15, 32, %s17, [#allocation3], 16, 16, 1
    $region5: #{tpu_custom_call.1} parent=1 // pred_fallthru
      _
    // Predicated region
    $region6: #{tpu_custom_call.1} parent=1 // pred_check
      _
    $region7: #{tpu_custom_call.1} parent=1 // pred_check_branch
      %24 = sbr.rel (0) target = $region9
    $region8: #{tpu_custom_call.1} parent=1 // pred_region
      %26 = vsyncadd [#allocation6], 0
      %s27 = sshll.u32 %s1, 4
      %s28 = int_to_ptr.hbm [resolvable:$true] %s27
      %s29 = sshll.u32 [#allocation5], 4
      %s30 = int_to_ptr.vmem [resolvable:$true] %s29
      %35 = dma.hbm_to_vmem [thread:$0]  %s28, 256, %s30, [#allocation6], 128, 128, 8
    $region9: #{tpu_custom_call.1} parent=1 // pred_fallthru
      _
    // Predicated region
    $region10: #{tpu_custom_call.1} parent=1 // pred_check
      _
    $region11: #{tpu_custom_call.1} parent=1 // pred_check_branch
      %37 = sbr.rel (0) target = $region13
    $region12: #{tpu_custom_call.1} parent=1 // pred_region
      %39 = dma.done [#allocation3], 32
    $region13: #{tpu_custom_call.1} parent=1 // pred_fallthru
      _
    // Predicated region
    $region14: #{tpu_custom_call.1} parent=1 // pred_check
      _
    $region15: #{tpu_custom_call.1} parent=1 // pred_check_branch
      %41 = sbr.rel (0) target = $region17
    $region16: #{tpu_custom_call.1} parent=1 // pred_region
      %43 = dma.done [#allocation6], 256
    $region17: #{tpu_custom_call.1} parent=1 // pred_fallthru
      _
    %v44 = vld [vmem:[#allocation2] sm:$0x1]
    %v45 = vld [vmem:[#allocation2 + $0x1] sm:$0x1]
    %vm46 = vcmp.ne.s32.totalorder %v44, 0
    %vm47 = vcmp.ne.s32.totalorder %v45, 0
    %v48 = vsel %vm46, 1, 0
    %v49 = vsel %vm47, 1, 0
    %v50 = vcvt.s32.f32 %v48
    %v51 = vcvt.s32.f32 %v49
    %vm52 = vcmask 57344
    %v53 = vsel %vm52, %v50, 0.0
    %54 = vadd.xlane.f32.xlu0 %v53
    %v55 = vpop.xlane.xlu0 %54
    %v56 = vsel %vm52, %v51, 0.0
    %57 = vadd.xlane.f32.xlu0 %v56
    %v58 = vpop.xlane.xlu0 %57
    %v59 = vld [vmem:[#allocation5] sm:$0xff]
    %v60 = vld [vmem:[#allocation5 + $0x8] sm:$0xff]
    %vm61 = vcmask 64512
    %v63 = vsel %vm61, %v50, 0
    %65 = vmatpush.msra.mxu0 0.0
    %66 = vmatpush.msra.mxu0 0.0
    %67 = vmatpush.msra.mxu0 0.0
    %68 = vmatpush.msra.mxu0 0.0
    %69 = vmatpush.msra.mxu0 0.0
    %70 = vmatpush.msra.mxu0 0.0
    %71 = vmatpush.msra.mxu0 0.0
    %72 = vmatpush.msra.mxu0 0.0
    %73 = vmatpush.msra.mxu0 0.0
    %74 = vmatpush.msra.mxu0 0.0
    %75 = vmatpush.msra.mxu0 0.0
    %76 = vmatpush.msra.mxu0 0.0
    %77 = vmatpush.msra.mxu0 0.0
    %78 = vmatpush.msra.mxu0 0.0
    %79 = vmatpush.msra.mxu0 0.0
    %80 = vmatpush.msra.mxu0 %v59
    %81 = vmatmul.f32.gmra.mxu0 %v63
    %v82 = vpop.f32.mrf.mxu0
    %v83 = vadd.f32 0.0, %v82
    %84 = vdwg.mxu0
    %v86 = vsel %vm61, %v51, 0
    %88 = vmatpush.msra.mxu0 0.0
    %89 = vmatpush.msra.mxu0 0.0
    %90 = vmatpush.msra.mxu0 0.0
    %91 = vmatpush.msra.mxu0 0.0
    %92 = vmatpush.msra.mxu0 0.0
    %93 = vmatpush.msra.mxu0 0.0
    %94 = vmatpush.msra.mxu0 0.0
    %95 = vmatpush.msra.mxu0 0.0
    %96 = vmatpush.msra.mxu0 0.0
    %97 = vmatpush.msra.mxu0 0.0
    %98 = vmatpush.msra.mxu0 0.0
    %99 = vmatpush.msra.mxu0 0.0
    %100 = vmatpush.msra.mxu0 0.0
    %101 = vmatpush.msra.mxu0 0.0
    %102 = vmatpush.msra.mxu0 0.0
    %103 = vmatpush.msra.mxu0 %v60
    %104 = vmatmul.f32.gmra.mxu0 %v86
    %v105 = vpop.f32.mrf.mxu0
    %v106 = vadd.f32 0.0, %v105
    %107 = vdwg.mxu0
    %v108 = vrcp.pop %v55
    %v109 = vmul.f32 %v55, %v108
    %v110 = vsub.f32 1.0, %v109
    %v111 = vmul.f32 %v108, %v110
    %v112 = vadd.f32 %v108, %v111
    %vm113 = vweird.f32 %v55
    %vm114 = vweird.f32 %v108
    %vm115 = vmor %vm113, %vm114
    %v116 = vsel %vm115, %v108, %v112
    %v117 = vand.u32 2147483647, %v55
    %vm118 = vcmp.eq.f32.partialorder %v117, 8.507059e+37
    %v119 = vand.u32 %v55, 2147483648
    %v120 = vor.u32 1.1754944e-38, %v119
    %v121 = vsel %vm118, %v120, %v116
    %v122 = vmul.f32 1.0, %v121
    %v123 = vrcp.pop %v58
    %v124 = vmul.f32 %v58, %v123
    %v125 = vsub.f32 1.0, %v124
    %v126 = vmul.f32 %v123, %v125
    %v127 = vadd.f32 %v123, %v126
    %vm128 = vweird.f32 %v58
    %vm129 = vweird.f32 %v123
    %vm130 = vmor %vm128, %vm129
    %v131 = vsel %vm130, %v123, %v127
    %v132 = vand.u32 2147483647, %v58
    %vm133 = vcmp.eq.f32.partialorder %v132, 8.507059e+37
    %v134 = vand.u32 %v58, 2147483648
    %v135 = vor.u32 1.1754944e-38, %v134
    %v136 = vsel %vm133, %v135, %v131
    %v137 = vmul.f32 1.0, %v136
    %v138 = vmul.f32 %v83, %v122
    %v139 = vmul.f32 %v106, %v137
    %vm140 = vcmask 253952
    %141 = vst.msk [vmem:[#allocation7] sm:$0x1] %vm140, %v138
    %142 = vst.msk [vmem:[#allocation7 + $0x1] sm:$0x1] %vm140, %v139
    // Predicated region
    $region18: #{tpu_custom_call.1} parent=1 // pred_check
      _
    $region19: #{tpu_custom_call.1} parent=1 // pred_check_branch
      %144 = sbr.rel (0) target = $region21
    $region20: #{tpu_custom_call.1} parent=1 // pred_region
      %146 = vsyncadd [#allocation4], 0
      %s147 = sshll.u32 [#allocation7], 4
      %s148 = int_to_ptr.vmem [resolvable:$true] %s147
      %s149 = sshll.u32 %s2, 4
      %s150 = int_to_ptr.hbm [resolvable:$true] %s149
      %155 = dma.vmem_to_hbm [thread:$0]  %s148, 32, %s150, [#allocation4], 16, 16, 1
    $region21: #{tpu_custom_call.1} parent=1 // pred_fallthru
      _
    // Predicated region
    $region22: #{tpu_custom_call.1} parent=1 // pred_check
      _
    $region23: #{tpu_custom_call.1} parent=1 // pred_check_branch
      %157 = sbr.rel (0) target = $region25
    $region24: #{tpu_custom_call.1} parent=1 // pred_region
      %159 = dma.done [#allocation4], 32
    $region25: #{tpu_custom_call.1} parent=1 // pred_fallthru
      _
    %160 = vsyncpa [#allocation3], 1
    %161 = vsyncpa [#allocation6], 1
    %162 = vsyncpa [#allocation4], 1

</llo_original>
